<compile_context>
chip_gen: v7x
topology: tpu7x:2x2x1
jax: 0.10.0
libtpu: 0.0.40
codegen_flags: <defaults>
</compile_context>

<pallas_src>
import math

import jax
import jax.numpy as jnp
import numpy as np
from jax.experimental import pallas as pl
from jax.experimental.pallas import tpu as pltpu


def _round_up(x, m):
    return (x + m - 1) // m * m


def _choose_n_tile(n_padded, cin, oc, budget_bytes=12 * 1024 * 1024):
    """Largest lane-aligned N tile whose VMEM footprint fits the budget.

    Per output column (f32): streamed inputs (cin + 3 + oc) + output (oc),
    double-buffered, plus the single-buffered in-kernel f32 conv temporary (oc).
    Budget leaves ample headroom under the 32 MiB scoped limit (v7x has only
    64 MiB physical VMEM per TensorCore)."""
    col_bytes = 2 * 4 * (cin + 3 + 2 * oc) + 4 * oc
    for cand in (2048, 1024, 512, 256, 128):
        if n_padded % cand == 0 and cand * col_bytes <= budget_bytes:
            return cand
    return 128


# ----------------------------- Pallas kernel ------------------------------ #
def pointconv_kernel(xs_ref, rel_ref, wf_ref, wr_ref, kbias_ref, kern_ref, o_ref):
    """Per grid step (batch, N-tile), all f32:
       xs_ref   : (Cin, Nt)  K-summed residual neighbor features
       rel_ref  : (3, Nt)    K-summed relative coordinates
       wf_ref   : (OC, Cin)  1x1-conv weight, feature part
       wr_ref   : (OC, 3)    1x1-conv weight, rel-xyz part
       kbias_ref: (OC, 1)    pre-folded K * bias
       kern_ref : (OC, Nt)   gathered depthwise kernel values
       o_ref    : (OC, Nt)   output
    """
    conv = jax.lax.dot_general(
        wf_ref[...], xs_ref[...],
        dimension_numbers=(((1,), (0,)), ((), ())),
        preferred_element_type=jnp.float32,
        precision=jax.lax.Precision.HIGHEST)
    conv = conv + jax.lax.dot_general(
        wr_ref[...], rel_ref[...],
        dimension_numbers=(((1,), (0,)), ((), ())),
        preferred_element_type=jnp.float32,
        precision=jax.lax.Precision.HIGHEST)
    o_ref[...] = kern_ref[...] * (conv + kbias_ref[...])


# ------------------------------- JAX glue ---------------------------------- #
def gather_ksum(fea, knn_idx):
    """fea: (B, Cin, Npts), knn_idx: (B, N, K) -> (B, Cin, N).

    K-sum of batch_gather(..., mode='residual') computed directly in the
    channels-first layout the kernel consumes:
        sum_k out_k = sum_k fea[..., knn_k] - (K-1) * fea[..., knn_0]."""
    b, n, k = knn_idx.shape
    gathered = jnp.take_along_axis(
        fea[:, :, None, :], knn_idx[:, None, :, :], axis=-1)        # (B, Cin, N, K)
    total = jnp.sum(gathered, axis=-1)                              # (B, Cin, N)
    center = jnp.take_along_axis(fea, knn_idx[:, None, :, 0], axis=-1)
    return total - (k - 1) * center


def gather_dw_kernel(conv_dw, sample_xyz, b, oc, n):
    """Replicates torch: conv_dw[:, :, cz, cy, cx].view(b, oc, -1, n).
    Adjacent-advanced-index semantics give the same (1, OC, B, N, 1) result as
    torch, and the row-major reshape reproduces torch's .view exactly
    (including its batch/channel interleaving behaviour for B > 1)."""
    coord = (jnp.clip(sample_xyz, -0.99999, 0.99999) * 5 / 2).astype(jnp.int32) + 2
    kern = conv_dw[:, :, coord[..., 2:3], coord[..., 1:2], coord[..., 0:1]]
    kern = kern.reshape(b, oc, 1, n)                                # == torch .view
    return kern[:, :, 0, :]                                         # (B, OC, N)


@jax.jit
def pointconv_sm_forward(sample_xyz, rel_xyz, fea, knn_idx, w, bias, conv_dw):
    b, n, k = knn_idx.shape
    cin = fea.shape[1]
    oc = w.shape[0]

    # Pre-reduce over K (linearity of the 1x1 conv): kernel streams (B, C, N).
    xs = gather_ksum(fea.astype(jnp.float32), knn_idx)              # (B, Cin, N)
    rel_sum = jnp.sum(rel_xyz.astype(jnp.float32), axis=2)          # (B, 3, N)

    # Depthwise-kernel gather (tiny), kept f32 (no bf16 round trip).
    kern = gather_dw_kernel(conv_dw, sample_xyz, b, oc, n)          # (B, OC, N)

    # Split the 1x1 weight; fold K into the bias once.
    w_fea = w[:, :cin].astype(jnp.float32)                          # (OC, Cin)
    w_rel = w[:, cin:].astype(jnp.float32)                          # (OC, 3)
    kbias = (bias * k).reshape(oc, 1).astype(jnp.float32)           # (OC, 1)

    # Pad N to a lane-aligned multiple of 128 (tile granularity & v7x cores).
    n_padded = _round_up(n, 128)
    if n_padded != n:
        padn = ((0, 0), (0, 0), (0, n_padded - n))
        xs = jnp.pad(xs, padn)
        rel_sum = jnp.pad(rel_sum, padn)
        kern = jnp.pad(kern, padn)

    n_tile = _choose_n_tile(n_padded, cin, oc)

    out = pl.pallas_call(
        pointconv_kernel,
        out_shape=jax.ShapeDtypeStruct((b, oc, n_padded), jnp.float32),
        grid_spec=pltpu.PrefetchScalarGridSpec(
            num_scalar_prefetch=0,
            grid=(b, n_padded // n_tile),
            in_specs=[
                pl.BlockSpec((None, cin, n_tile), lambda bi, ni: (bi, 0, ni)),
                pl.BlockSpec((None, 3, n_tile), lambda bi, ni: (bi, 0, ni)),
                pl.BlockSpec((oc, cin), lambda bi, ni: (0, 0)),
                pl.BlockSpec((oc, 3), lambda bi, ni: (0, 0)),
                pl.BlockSpec((oc, 1), lambda bi, ni: (0, 0)),
                pl.BlockSpec((None, oc, n_tile), lambda bi, ni: (bi, 0, ni)),
            ],
            out_specs=pl.BlockSpec((None, oc, n_tile), lambda bi, ni: (bi, 0, ni)),
        ),
        compiler_params=pltpu.CompilerParams(
            dimension_semantics=("parallel", "parallel"),
            vmem_limit_bytes=32 * 1024 * 1024),
    )(xs, rel_sum, w_fea, w_rel, kbias, kern)

    if n_padded != n:
        out = out[:, :, :n]
    return out


# --------------------------- pure-JAX reference ---------------------------- #
def batch_gather_residual(x, knn_idx):
    """x: (B, C, Npts), knn_idx: (B, N, K) -> (B, C, K, N) residual gather
    (faithful transcription of batch_gather(..., mode='residual'))."""
    b, n, k = knn_idx.shape
    idx = jnp.broadcast_to(jnp.arange(b).reshape(-1, 1, 1), (b, n, k - 1))
    center = x[idx[..., 0:1], :, knn_idx[..., 0:1]]                 # (B, N, 1, C)
    neigh = x[idx, :, knn_idx[..., 1:]] - center                    # (B, N, K-1, C)
    out = jnp.concatenate([center, neigh], axis=2)                  # (B, N, K, C)
    return jnp.transpose(out, (0, 3, 2, 1))                         # (B, C, K, N)


def reference_forward(sample_xyz, rel_xyz, fea, knn_idx, w, bias, conv_dw):
    """Pure-JAX f32 transcription of the PyTorch forward (dense branch)."""
    b, n, k = knn_idx.shape
    oc = w.shape[0]
    nf = batch_gather_residual(fea, knn_idx)
    nf = jnp.concatenate([nf, rel_xyz], axis=1)                     # (B, C, K, N)
    conv = jnp.einsum('oc,bckn->bokn', w, nf,
                      precision=jax.lax.Precision.HIGHEST) + bias.reshape(1, -1, 1, 1)
    kern = gather_dw_kernel(conv_dw, sample_xyz, b, oc, n)          # (B, OC, N)
    return (kern[:, :, None, :] * conv).sum(2)                      # (B, OC, N)


# --------------------------------- main ------------------------------------ #
if __name__ == "__main__":
    B, Cin, Cout, K, N = 2, 4, 8, 8, 16     # n_neighbor = K
    Npts = 16
    kernel_size = 5

    key = jax.random.PRNGKey(0)
    ks = jax.random.split(key, 7)

    sample_xyz = jax.random.uniform(ks[0], (B, N, 3), jnp.float32, -1.0, 1.0)
    rel_xyz = jax.random.normal(ks[1], (B, 3, K, N), jnp.float32)
    fea = jax.random.normal(ks[2], (B, Cin, Npts), jnp.float32)
    knn_idx = jax.random.randint(ks[3], (B, N, K), 0, Npts, jnp.int32)

    # Deterministic parameter init (mirrors shapes in __init__, not torch RNG).
    w = jax.random.normal(ks[4], (Cout, Cin + 3), jnp.float32) * 0.1
    bias = jax.random.normal(ks[5], (Cout,), jnp.float32) * 0.1
    gain = math.sqrt(2.0)
    bound = math.sqrt(3.0) * gain / math.sqrt(K)
    conv_dw = jax.random.uniform(
        ks[6], (1, Cout, kernel_size, kernel_size, kernel_size),
        jnp.float32, -bound, bound)

    out = pointconv_sm_forward(sample_xyz, rel_xyz, fea, knn_idx, w, bias, conv_dw)
    out = jax.block_until_ready(out)

    ref = reference_forward(sample_xyz, rel_xyz, fea, knn_idx, w, bias, conv_dw)
    ref = jax.block_until_ready(ref)

    assert out.shape == (B, Cout, N), out.shape
    # Everything stays f32 now; tolerance only covers MXU accumulation-order /
    # pass differences (observed error is far smaller).
    np.testing.assert_allclose(np.asarray(out), np.asarray(ref), rtol=1e-2, atol=1e-2)
    print("KERNEL_OK")
</pallas_src>

<mosaic_0001>
module attributes {stable_mosaic.version = 11 : i64} {
  func.func @pointconv_kernel(%arg0: i32, %arg1: i32, %arg2: memref<1x4x128xf32, #tpu.memory_space<vmem>>, %arg3: memref<1x3x128xf32, #tpu.memory_space<vmem>>, %arg4: memref<8x4xf32, #tpu.memory_space<vmem>>, %arg5: memref<8x3xf32, #tpu.memory_space<vmem>>, %arg6: memref<8x1xf32, #tpu.memory_space<vmem>>, %arg7: memref<1x8x128xf32, #tpu.memory_space<vmem>>, %arg8: memref<1x8x128xf32, #tpu.memory_space<vmem>>) attributes {dimension_semantics = [#tpu.dimension_semantics<parallel>, #tpu.dimension_semantics<parallel>], iteration_bounds = array<i64: 2, 1>, scalar_prefetch = 0 : i64, scratch_operands = 0 : i64, tpu.core_type = #tpu.core_type<tc>, window_params = [{transform_indices = @transform_0, window_bounds = array<i64: 1, 4, 128>}, {transform_indices = @transform_1, window_bounds = array<i64: 1, 3, 128>}, {pipeline_mode = #tpu.pipeline_mode<synchronous>, transform_indices = @transform_2, window_bounds = array<i64: 8, 4>}, {pipeline_mode = #tpu.pipeline_mode<synchronous>, transform_indices = @transform_3, window_bounds = array<i64: 8, 3>}, {pipeline_mode = #tpu.pipeline_mode<synchronous>, transform_indices = @transform_4, window_bounds = array<i64: 8, 1>}, {transform_indices = @transform_5, window_bounds = array<i64: 1, 8, 128>}, {transform_indices = @transform_6, window_bounds = array<i64: 1, 8, 128>}]} {
    %c0 = arith.constant 0 : index
    %c0_0 = arith.constant 0 : index
    %0 = vector.load %arg4[%c0, %c0_0] : memref<8x4xf32, #tpu.memory_space<vmem>>, vector<8x4xf32>
    %c0_1 = arith.constant 0 : index
    %c0_2 = arith.constant 0 : index
    %c0_3 = arith.constant 0 : index
    %1 = vector.load %arg2[%c0_1, %c0_2, %c0_3] : memref<1x4x128xf32, #tpu.memory_space<vmem>>, vector<1x4x128xf32>
    %2 = vector.shape_cast %1 : vector<1x4x128xf32> to vector<4x128xf32>
    %cst = arith.constant dense<0.000000e+00> : vector<8x128xf32>
    %3 = tpu.matmul %0, %2, %cst {dimension_numbers = #tpu.dot_dimension_numbers<[1], [0], [0], [1], [0, 0, 1, 1], [], []>, precision = #tpu.contract_precision<fp32>} : vector<8x4xf32>, vector<4x128xf32>, vector<8x128xf32> -> vector<8x128xf32>
    %c0_4 = arith.constant 0 : index
    %c0_5 = arith.constant 0 : index
    %4 = vector.load %arg5[%c0_4, %c0_5] : memref<8x3xf32, #tpu.memory_space<vmem>>, vector<8x3xf32>
    %c0_6 = arith.constant 0 : index
    %c0_7 = arith.constant 0 : index
    %c0_8 = arith.constant 0 : index
    %5 = vector.load %arg3[%c0_6, %c0_7, %c0_8] : memref<1x3x128xf32, #tpu.memory_space<vmem>>, vector<1x3x128xf32>
    %6 = vector.shape_cast %5 : vector<1x3x128xf32> to vector<3x128xf32>
    %cst_9 = arith.constant dense<0.000000e+00> : vector<8x128xf32>
    %7 = tpu.matmul %4, %6, %cst_9 {dimension_numbers = #tpu.dot_dimension_numbers<[1], [0], [0], [1], [0, 0, 1, 1], [], []>, precision = #tpu.contract_precision<fp32>} : vector<8x3xf32>, vector<3x128xf32>, vector<8x128xf32> -> vector<8x128xf32>
    %8 = arith.addf %3, %7 : vector<8x128xf32>
    %c0_10 = arith.constant 0 : index
    %c0_11 = arith.constant 0 : index
    %c0_12 = arith.constant 0 : index
    %9 = vector.load %arg7[%c0_10, %c0_11, %c0_12] : memref<1x8x128xf32, #tpu.memory_space<vmem>>, vector<1x8x128xf32>
    %10 = vector.shape_cast %9 : vector<1x8x128xf32> to vector<8x128xf32>
    %c0_13 = arith.constant 0 : index
    %c0_14 = arith.constant 0 : index
    %11 = vector.load %arg6[%c0_13, %c0_14] : memref<8x1xf32, #tpu.memory_space<vmem>>, vector<8x1xf32>
    %12 = vector.broadcast %11 : vector<8x1xf32> to vector<8x128xf32>
    %13 = arith.addf %8, %12 : vector<8x128xf32>
    %14 = arith.mulf %10, %13 : vector<8x128xf32>
    %c0_15 = arith.constant 0 : index
    %c0_16 = arith.constant 0 : index
    %c0_17 = arith.constant 0 : index
    %15 = vector.load %arg8[%c0_15, %c0_16, %c0_17] : memref<1x8x128xf32, #tpu.memory_space<vmem>>, vector<1x8x128xf32>
    %16 = vector.shape_cast %15 : vector<1x8x128xf32> to vector<8x128xf32>
    %17 = vector.shape_cast %14 : vector<8x128xf32> to vector<1x8x128xf32>
    tpu.vector_store %arg8[%c0_15, %c0_16, %c0_17], %17 {strides = array<i32>} : memref<1x8x128xf32, #tpu.memory_space<vmem>>, vector<1x8x128xf32>,
    return
  }
  func.func @transform_0(%arg0: i32, %arg1: i32) -> (i32, i32, i32) {
    %c0_i32 = arith.constant 0 : i32
    %c0_i32_0 = arith.constant 0 : i32
    return %arg0, %c0_i32, %arg1 : i32, i32, i32
  }
  func.func @transform_1(%arg0: i32, %arg1: i32) -> (i32, i32, i32) {
    %c0_i32 = arith.constant 0 : i32
    %c0_i32_0 = arith.constant 0 : i32
    return %arg0, %c0_i32, %arg1 : i32, i32, i32
  }
  func.func @transform_2(%arg0: i32, %arg1: i32) -> (i32, i32) {
    %c0_i32 = arith.constant 0 : i32
    %c0_i32_0 = arith.constant 0 : i32
    %c0_i32_1 = arith.constant 0 : i32
    return %c0_i32, %c0_i32_0 : i32, i32
  }
  func.func @transform_3(%arg0: i32, %arg1: i32) -> (i32, i32) {
    %c0_i32 = arith.constant 0 : i32
    %c0_i32_0 = arith.constant 0 : i32
    %c0_i32_1 = arith.constant 0 : i32
    return %c0_i32, %c0_i32_0 : i32, i32
  }
  func.func @transform_4(%arg0: i32, %arg1: i32) -> (i32, i32) {
    %c0_i32 = arith.constant 0 : i32
    %c0_i32_0 = arith.constant 0 : i32
    %c0_i32_1 = arith.constant 0 : i32
    return %c0_i32, %c0_i32_0 : i32, i32
  }
  func.func @transform_5(%arg0: i32, %arg1: i32) -> (i32, i32, i32) {
    %c0_i32 = arith.constant 0 : i32
    %c0_i32_0 = arith.constant 0 : i32
    return %arg0, %c0_i32, %arg1 : i32, i32, i32
  }
  func.func @transform_6(%arg0: i32, %arg1: i32) -> (i32, i32, i32) {
    %c0_i32 = arith.constant 0 : i32
    %c0_i32_0 = arith.constant 0 : i32
    return %arg0, %c0_i32, %arg1 : i32, i32, i32
  }
}

</mosaic_0001>

<llo_original>
// kernel: pointconv_sm_forward.1
$region0: #{pointconv_sm_forward.1}
  #allocation0 [shape = 'u32[]', space=smem, size = 0x4, offset = 0x4, fixed_abs, tag = 'smem constant byte address 0x4 - core index']
  #allocation1 [shape = 'u32[144,128]{1,0:T(1,128)}', space=vmem, size = 0x12000, scoped, tag = 'internal scratch']
  %s0 = inlined_call_operand.vmem [shape: f32[2,4,128], index: 0, kind: input, shape index: {}]
  %s1 = inlined_call_operand.vmem [shape: f32[2,3,128], index: 1, kind: input, shape index: {}]
  %s2 = inlined_call_operand.vmem [shape: f32[8,4], index: 2, kind: input, shape index: {}]
  %s3 = inlined_call_operand.vmem [shape: f32[8,3], index: 3, kind: input, shape index: {}]
  %s4 = inlined_call_operand.vmem [shape: f32[8,1], index: 4, kind: input, shape index: {}]
  %s5 = inlined_call_operand.vmem [shape: f32[2,8,128], index: 5, kind: input, shape index: {}]
  %s6 = inlined_call_operand.hbm [shape: f32[2,8,128], index: 6, kind: output, shape index: {}]
  %s7 = sld [smem:[#allocation0]]
  $region57: #{pointconv_sm_forward.1} parent=0
    _
  %s9 = ssub.s32 1, %s7
  %s10 = scalar_select 0, %s9, %s7
  $region1: #{pointconv_sm_forward.1} parent=0
    #allocation2 [shape = 'u8[8192]{0}', space=vmem, size = 0x2000, scoped, tag = 'output window, operand 0']
    #allocation3 [shape = 's32[2]{0}', space=sflag, size = 0x8, scoped, tag = 'scoped memory for pointconv_sm_forward.1']
    %11 = vsyncpa [#allocation3], 0
    %s12 = scalar_lea.sflag [#allocation3], 1
    %13 = vsyncpa %s12, 0
    loop: start=0, step=1, limit=4
    $region2: #{pointconv_sm_forward.1} parent=1 // loop_pre_header
      _
    $region3: #{pointconv_sm_forward.1} parent=1 // loop_header
      %s15 = sphi 0, %s19
      %p16 = scmp.ge.s32.totalorder %s15, 4
      %s22 = sphi 0, %s34
      %s23 = sphi 0, %s30
      %s24 = sphi 0, %s22
      %s25 = sphi 0, %s23
      %s26 = sphi 0, %s24
      %s27 = sphi 0, %s25
      %s39 = sphi 0, %s41
      %s42 = sphi 0, %s39
      %s43 = sphi 0, %s42
      %s59 = sphi 0, %s43
      %s67 = sphi 0, %s69
      %s70 = sphi 0, %s67
      %s71 = sphi 0, %s70
      %s87 = sphi 0, %s71
      %s91 = sphi 0, %s91
      %s93 = sphi 0, %s91
      %s94 = sphi 0, %s93
      %s108 = sphi 0, %s94
      %s112 = sphi 0, %s112
      %s114 = sphi 0, %s112
      %s115 = sphi 0, %s114
      %s129 = sphi 0, %s115
      %s133 = sphi 0, %s133
      %s135 = sphi 0, %s133
      %s136 = sphi 0, %s135
      %s150 = sphi 0, %s136
      %s158 = sphi 0, %s160
      %s161 = sphi 0, %s158
      %s162 = sphi 0, %s161
      %s178 = sphi 0, %s162
      %s186 = sphi 0, %s188
      %s189 = sphi 0, %s186
      %s190 = sphi 0, %s189
      %s206 = sphi 0, %s190
    $region4: #{pointconv_sm_forward.1} parent=1 // loop_header_branch
      %18 = sbr.rel (%p16) target = $region8
    $region5: #{pointconv_sm_forward.1} parent=1 // loop_body
      %s20 = ssub.s32 %s15, 1
      %s21 = ssub.s32 %s15, 2
      %s28 = sadd.s32 1, %s23
      %p29 = scmp.ge.s32.totalorder %s28, 1
      %s30 = scalar_select %p29, 0, %s28
      %s31 = sadd.s32 1, %s22
      %s32 = scalar_select %p29, %s31, %s22
      %p33 = scmp.ge.s32.totalorder %s32, 2
      %s34 = scalar_select %p33, 0, %s32
      %s35 = ssub.s32 %s22, %s34
      %s36 = ssub.s32 %s23, %s30
      %s37 = sor.u32 %s35, %s36
      %p38 = scmp.eq.s32.totalorder %s37, 0
      %s40 = sadd.s32 %s39, 1
      %s41 = scalar_select %p38, %s39, %s40
      %p44 = pneg %p38
      %p45 = scmp.eq.s32.totalorder %s15, 1
      %p46 = por %p44, %p45
      %p47 = scmp.ne.s32.totalorder %s39, %s42
      %p48 = scmp.eq.s32.totalorder %s15, 0
      %p49 = por %p47, %p48
      %p50 = scmp.ne.s32.totalorder %s39, %s42
      %p51 = scmp.eq.s32.totalorder %s20, 1
      %p52 = por %p50, %p51
      %p53 = scmp.ne.s32.totalorder %s42, %s43
      %p54 = scmp.eq.s32.totalorder %s20, 0
      %p55 = por %p53, %p54
      %p56 = scmp.ne.s32.totalorder %s42, %s43
      %p57 = scmp.eq.s32.totalorder %s21, 1
      %p58 = por %p56, %p57
      %p60 = scmp.ne.s32.totalorder %s43, %s59
      %p61 = scmp.eq.s32.totalorder %s21, 0
      %p62 = por %p60, %p61
      %s63 = ssub.s32 %s22, %s34
      %s64 = ssub.s32 %s23, %s30
      %s65 = sor.u32 %s63, %s64
      %p66 = scmp.eq.s32.totalorder %s65, 0
      %s68 = sadd.s32 %s67, 1
      %s69 = scalar_select %p66, %s67, %s68
      %p72 = pneg %p66
      %p73 = scmp.eq.s32.totalorder %s15, 1
      %p74 = por %p72, %p73
      %p75 = scmp.ne.s32.totalorder %s67, %s70
      %p76 = scmp.eq.s32.totalorder %s15, 0
      %p77 = por %p75, %p76
      %p78 = scmp.ne.s32.totalorder %s67, %s70
      %p79 = scmp.eq.s32.totalorder %s20, 1
      %p80 = por %p78, %p79
      %p81 = scmp.ne.s32.totalorder %s70, %s71
      %p82 = scmp.eq.s32.totalorder %s20, 0
      %p83 = por %p81, %p82
      %p84 = scmp.ne.s32.totalorder %s70, %s71
      %p85 = scmp.eq.s32.totalorder %s21, 1
      %p86 = por %p84, %p85
      %p88 = scmp.ne.s32.totalorder %s71, %s87
      %p89 = scmp.eq.s32.totalorder %s21, 0
      %p90 = por %p88, %p89
      %s92 = sadd.s32 %s91, 1
      %p95 = scmp.eq.s32.totalorder %s15, 1
      %p96 = scmp.ne.s32.totalorder %s91, %s93
      %p97 = scmp.eq.s32.totalorder %s15, 0
      %p98 = por %p96, %p97
      %p99 = scmp.ne.s32.totalorder %s91, %s93
      %p100 = scmp.eq.s32.totalorder %s20, 1
      %p101 = por %p99, %p100
      %p102 = scmp.ne.s32.totalorder %s93, %s94
      %p103 = scmp.eq.s32.totalorder %s20, 0
      %p104 = por %p102, %p103
      %p105 = scmp.ne.s32.totalorder %s93, %s94
      %p106 = scmp.eq.s32.totalorder %s21, 1
      %p107 = por %p105, %p106
      %p109 = scmp.ne.s32.totalorder %s94, %s108
      %p110 = scmp.eq.s32.totalorder %s21, 0
      %p111 = por %p109, %p110
      %s113 = sadd.s32 %s112, 1
      %p116 = scmp.eq.s32.totalorder %s15, 1
      %p117 = scmp.ne.s32.totalorder %s112, %s114
      %p118 = scmp.eq.s32.totalorder %s15, 0
      %p119 = por %p117, %p118
      %p120 = scmp.ne.s32.totalorder %s112, %s114
      %p121 = scmp.eq.s32.totalorder %s20, 1
      %p122 = por %p120, %p121
      %p123 = scmp.ne.s32.totalorder %s114, %s115
      %p124 = scmp.eq.s32.totalorder %s20, 0
      %p125 = por %p123, %p124
      %p126 = scmp.ne.s32.totalorder %s114, %s115
      %p127 = scmp.eq.s32.totalorder %s21, 1
      %p128 = por %p126, %p127
      %p130 = scmp.ne.s32.totalorder %s115, %s129
      %p131 = scmp.eq.s32.totalorder %s21, 0
      %p132 = por %p130, %p131
      %s134 = sadd.s32 %s133, 1
      %p137 = scmp.eq.s32.totalorder %s15, 1
      %p138 = scmp.ne.s32.totalorder %s133, %s135
      %p139 = scmp.eq.s32.totalorder %s15, 0
      %p140 = por %p138, %p139
      %p141 = scmp.ne.s32.totalorder %s133, %s135
      %p142 = scmp.eq.s32.totalorder %s20, 1
      %p143 = por %p141, %p142
      %p144 = scmp.ne.s32.totalorder %s135, %s136
      %p145 = scmp.eq.s32.totalorder %s20, 0
      %p146 = por %p144, %p145
      %p147 = scmp.ne.s32.totalorder %s135, %s136
      %p148 = scmp.eq.s32.totalorder %s21, 1
      %p149 = por %p147, %p148
      %p151 = scmp.ne.s32.totalorder %s136, %s150
      %p152 = scmp.eq.s32.totalorder %s21, 0
      %p153 = por %p151, %p152
      %s154 = ssub.s32 %s22, %s34
      %s155 = ssub.s32 %s23, %s30
      %s156 = sor.u32 %s154, %s155
      %p157 = scmp.eq.s32.totalorder %s156, 0
      %s159 = sadd.s32 %s158, 1
      %s160 = scalar_select %p157, %s158, %s159
      %p163 = pneg %p157
      %p164 = scmp.eq.s32.totalorder %s15, 1
      %p165 = por %p163, %p164
      %p166 = scmp.ne.s32.totalorder %s158, %s161
      %p167 = scmp.eq.s32.totalorder %s15, 0
      %p168 = por %p166, %p167
      %p169 = scmp.ne.s32.totalorder %s158, %s161
      %p170 = scmp.eq.s32.totalorder %s20, 1
      %p171 = por %p169, %p170
      %p172 = scmp.ne.s32.totalorder %s161, %s162
      %p173 = scmp.eq.s32.totalorder %s20, 0
      %p174 = por %p172, %p173
      %p175 = scmp.ne.s32.totalorder %s161, %s162
      %p176 = scmp.eq.s32.totalorder %s21, 1
      %p177 = por %p175, %p176
      %p179 = scmp.ne.s32.totalorder %s162, %s178
      %p180 = scmp.eq.s32.totalorder %s21, 0
      %p181 = por %p179, %p180
      %s182 = ssub.s32 %s22, %s34
      %s183 = ssub.s32 %s23, %s30
      %s184 = sor.u32 %s182, %s183
      %p185 = scmp.eq.s32.totalorder %s184, 0
      %s187 = sadd.s32 %s186, 1
      %s188 = scalar_select %p185, %s186, %s187
      %p191 = pneg %p185
      %p192 = scmp.eq.s32.totalorder %s15, 1
      %p193 = por %p191, %p192
      %p194 = scmp.ne.s32.totalorder %s186, %s189
      %p195 = scmp.eq.s32.totalorder %s15, 0
      %p196 = por %p194, %p195
      %p197 = scmp.ne.s32.totalorder %s186, %s189
      %p198 = scmp.eq.s32.totalorder %s20, 1
      %p199 = por %p197, %p198
      %p200 = scmp.ne.s32.totalorder %s189, %s190
      %p201 = scmp.eq.s32.totalorder %s20, 0
      %p202 = por %p200, %p201
      %p203 = scmp.ne.s32.totalorder %s189, %s190
      %p204 = scmp.eq.s32.totalorder %s21, 1
      %p205 = por %p203, %p204
      %p207 = scmp.ne.s32.totalorder %s190, %s206
      %p208 = scmp.eq.s32.totalorder %s21, 0
      %p209 = por %p207, %p208
      %p210 = scmp.le.s32.totalorder 1, %s15
      %p211 = scmp.lt.s32.totalorder %s15, 3
      %p212 = pnand %p210, %p211
      %p213 = pneg %p212
      // Predicated region
      $region9: #{pointconv_sm_forward.1} parent=5 // pred_check
        _
      $region10: #{pointconv_sm_forward.1} parent=5 // pred_check_branch
        %215 = sbr.rel (%p212) target = $region12
      $region11: #{pointconv_sm_forward.1} parent=5 // pred_region
        %s216 = ssub.s32 %s15, 1
        // Predicated region
        $region13: #{pointconv_sm_forward.1} parent=11 // pred_check
          %p217 = pneg %p104
        $region14: #{pointconv_sm_forward.1} parent=11 // pred_check_branch
          %219 = sbr.rel (%p217) target = $region16
        $region15: #{pointconv_sm_forward.1} parent=11 // pred_region
          _
        $region16: #{pointconv_sm_forward.1} parent=11 // pred_fallthru
          _
        // Predicated region
        $region17: #{pointconv_sm_forward.1} parent=11 // pred_check
          %p220 = pneg %p125
        $region18: #{pointconv_sm_forward.1} parent=11 // pred_check_branch
          %222 = sbr.rel (%p220) target = $region20
        $region19: #{pointconv_sm_forward.1} parent=11 // pred_region
          _
        $region20: #{pointconv_sm_forward.1} parent=11 // pred_fallthru
          _
        // Predicated region
        $region21: #{pointconv_sm_forward.1} parent=11 // pred_check
          %p223 = pneg %p146
        $region22: #{pointconv_sm_forward.1} parent=11 // pred_check_branch
          %225 = sbr.rel (%p223) target = $region24
        $region23: #{pointconv_sm_forward.1} parent=11 // pred_region
          _
        $region24: #{pointconv_sm_forward.1} parent=11 // pred_fallthru
          _
      $region12: #{pointconv_sm_forward.1} parent=5 // pred_fallthru
        _
      %p226 = scmp.lt.s32.totalorder %s15, 2
      // Predicated region
      $region25: #{pointconv_sm_forward.1} parent=5 // pred_check
        %p227 = pneg %p226
      $region26: #{pointconv_sm_forward.1} parent=5 // pred_check_branch
        %229 = sbr.rel (%p227) target = $region28
      $region27: #{pointconv_sm_forward.1} parent=5 // pred_region
        // Predicated region
        $region29: #{pointconv_sm_forward.1} parent=27 // pred_check
          %p230 = pneg %p49
        $region30: #{pointconv_sm_forward.1} parent=27 // pred_check_branch
          %232 = sbr.rel (%p230) target = $region32
        $region31: #{pointconv_sm_forward.1} parent=27 // pred_region
          %p233 = scmp.lt.s32.totalorder %s22, 1
          %s234 = scalar_select %p233, %s22, 1
          %p235 = scmp.lt.s32.totalorder %s23, 0
          %s236 = scalar_select %p235, %s23, 0
          %s237 = sadd.s32 %s236, %s234
          %s238 = smul.addr %s237, 4
          %s239 = scalar_lea.vmem %s0, %s238
        $region32: #{pointconv_sm_forward.1} parent=27 // pred_fallthru
          _
        // Predicated region
        $region33: #{pointconv_sm_forward.1} parent=27 // pred_check
          %p240 = pneg %p77
        $region34: #{pointconv_sm_forward.1} parent=27 // pred_check_branch
          %242 = sbr.rel (%p240) target = $region36
        $region35: #{pointconv_sm_forward.1} parent=27 // pred_region
          %p243 = scmp.lt.s32.totalorder %s22, 1
          %s244 = scalar_select %p243, %s22, 1
          %p245 = scmp.lt.s32.totalorder %s23, 0
          %s246 = scalar_select %p245, %s23, 0
          %s247 = sadd.s32 %s246, %s244
          %s248 = smul.addr %s247, 4
          %s249 = scalar_lea.vmem %s1, %s248
        $region36: #{pointconv_sm_forward.1} parent=27 // pred_fallthru
          _
        // Predicated region
        $region37: #{pointconv_sm_forward.1} parent=27 // pred_check
          %p250 = pneg %p168
        $region38: #{pointconv_sm_forward.1} parent=27 // pred_check_branch
          %252 = sbr.rel (%p250) target = $region40
        $region39: #{pointconv_sm_forward.1} parent=27 // pred_region
          %p253 = scmp.lt.s32.totalorder %s22, 1
          %s254 = scalar_select %p253, %s22, 1
          %p255 = scmp.lt.s32.totalorder %s23, 0
          %s256 = scalar_select %p255, %s23, 0
          %s257 = sadd.s32 %s256, %s254
          %s258 = smul.addr %s257, 8
          %s259 = scalar_lea.vmem %s5, %s258
        $region40: #{pointconv_sm_forward.1} parent=27 // pred_fallthru
          _
      $region28: #{pointconv_sm_forward.1} parent=5 // pred_fallthru
        _
      %p260 = scmp.le.s32.totalorder 1, %s15
      %p261 = scmp.lt.s32.totalorder %s15, 3
      %p262 = pnand %p260, %p261
      %p263 = pneg %p262
      // Predicated region
      $region41: #{pointconv_sm_forward.1} parent=5 // pred_check
        _
      $region42: #{pointconv_sm_forward.1} parent=5 // pred_check_branch
        %265 = sbr.rel (%p262) target = $region44
      $region43: #{pointconv_sm_forward.1} parent=5 // pred_region
        %s266 = ssub.s32 %s15, 1
        %p267 = scmp.lt.s32.totalorder %s24, 1
        %s268 = scalar_select %p267, %s24, 1
        %p269 = scmp.lt.s32.totalorder %s25, 0
        %s270 = scalar_select %p269, %s25, 0
        %s271 = sadd.s32 %s270, %s268
        %s272 = smul.addr %s271, 4
        %s273 = scalar_lea.vmem %s0, %s272
        %p274 = pneg %p55
        %p275 = pneg %p52
        %p276 = scmp.lt.s32.totalorder %s24, 1
        %s277 = scalar_select %p276, %s24, 1
        %p278 = scmp.lt.s32.totalorder %s25, 0
        %s279 = scalar_select %p278, %s25, 0
        %s280 = sadd.s32 %s279, %s277
        %s281 = smul.addr %s280, 4
        %s282 = scalar_lea.vmem %s1, %s281
        %p283 = pneg %p83
        %p284 = pneg %p80
        %p285 = pneg %p104
        %p286 = pneg %p101
        %p287 = pneg %p125
        %p288 = pneg %p122
        %p289 = pneg %p146
        %p290 = pneg %p143
        %p291 = scmp.lt.s32.totalorder %s24, 1
        %s292 = scalar_select %p291, %s24, 1
        %p293 = scmp.lt.s32.totalorder %s25, 0
        %s294 = scalar_select %p293, %s25, 0
        %s295 = sadd.s32 %s294, %s292
        %s296 = smul.addr %s295, 8
        %s297 = scalar_lea.vmem %s5, %s296
        %p298 = pneg %p174
        %p299 = pneg %p171
        %p300 = pneg %p202
        %p301 = pneg %p199
        %s302 = sand.u32 %s189, 1
        %s303 = scalar_lea.sflag [#allocation3], %s302
        %s304 = sand.u32 %s189, 1
        %s305 = smul.addr %s304, 8
        %s306 = scalar_lea.vmem [#allocation2], %s305
        %p307 = scmp.lt.s32.totalorder %s24, 1
        %s308 = scalar_select %p307, %s24, 1
        %p309 = scmp.lt.s32.totalorder %s25, 0
        %s310 = scalar_select %p309, %s25, 0
        %s311 = sadd.s32 %s310, %s308
        %s312 = smul.addr %s311, 4
        %s313 = scalar_lea.vmem %s0, %s312
        %p314 = scmp.lt.s32.totalorder %s24, 1
        %s315 = scalar_select %p314, %s24, 1
        %p316 = scmp.lt.s32.totalorder %s25, 0
        %s317 = scalar_select %p316, %s25, 0
        %s318 = sadd.s32 %s317, %s315
        %s319 = smul.addr %s318, 4
        %s320 = scalar_lea.vmem %s1, %s319
        %p321 = scmp.lt.s32.totalorder %s24, 1
        %s322 = scalar_select %p321, %s24, 1
        %p323 = scmp.lt.s32.totalorder %s25, 0
        %s324 = scalar_select %p323, %s25, 0
        %s325 = sadd.s32 %s324, %s322
        %s326 = smul.addr %s325, 8
        %s327 = scalar_lea.vmem %s5, %s326
        %v328 = vld [vmem:[%s2] sm:$0xff]
        %v329 = vld [vmem:[%s313] sm:$0xf]
        %v330 = vld [vmem:[%s3] sm:$0xff]
        %v331 = vld [vmem:[%s320] sm:$0x7]
        %vm332 = vcmask 23552
        %v334 = vsel %vm332, %v330, 0
        %vm336 = vcmask 1042432
        %v338 = vsel %vm336, %v331, 0
        %340 = vmatprep.subr.mxu0 0.0
        %v341 = vand.u32 %v338, 4294901760
        %342 = vmatpush1.msra.mxu0 %v341
        %343 = vmatprep.subr.mxu0 0.0
        %344 = vmatpush1.msra.mxu0 0.0
        %345 = vmatprep.subr.mxu0 0.0
        %346 = vmatpush1.msra.mxu0 0.0
        %347 = vmatprep.subr.mxu0 0.0
        %348 = vmatpush1.msra.mxu0 0.0
        %349 = vmatprep.subr.mxu0 0.0
        %350 = vmatpush1.msra.mxu0 0.0
        %351 = vmatprep.subr.mxu0 0.0
        %352 = vmatpush1.msra.mxu0 0.0
        %353 = vmatprep.subr.mxu0 0.0
        %354 = vmatpush1.msra.mxu0 0.0
        %355 = vmatprep.subr.mxu0 0.0
        %356 = vmatpush1.msra.mxu0 0.0
        %357 = vmatprep.subr.mxu0 0.0
        %358 = vmatpush1.msra.mxu0 0.0
        %359 = vmatprep.subr.mxu0 0.0
        %360 = vmatpush1.msra.mxu0 0.0
        %361 = vmatprep.subr.mxu0 0.0
        %362 = vmatpush1.msra.mxu0 0.0
        %363 = vmatprep.subr.mxu0 0.0
        %364 = vmatpush1.msra.mxu0 0.0
        %365 = vmatprep.subr.mxu0 0.0
        %366 = vmatpush1.msra.mxu0 0.0
        %367 = vmatprep.subr.mxu0 0.0
        %368 = vmatpush1.msra.mxu0 0.0
        %369 = vmatprep.subr.mxu0 0.0
        %370 = vmatpush1.msra.mxu0 0.0
        %371 = vmatprep.subr.mxu0 0.0
        %372 = vmatpush1.msra.mxu0 0.0
        %373 = vmatprep.subr.mxu0 0.0
        %374 = vmatpush1.msra.mxu0 0.0
        %375 = vmatprep.subr.mxu0 0.0
        %376 = vmatpush1.msra.mxu0 0.0
        %377 = vmatprep.subr.mxu0 0.0
        %378 = vmatpush1.msra.mxu0 0.0
        %379 = vmatprep.subr.mxu0 0.0
        %380 = vmatpush1.msra.mxu0 0.0
        %381 = vmatprep.subr.mxu0 0.0
        %382 = vmatpush1.msra.mxu0 0.0
        %383 = vmatprep.subr.mxu0 0.0
        %384 = vmatpush1.msra.mxu0 0.0
        %385 = vmatprep.subr.mxu0 0.0
        %386 = vmatpush1.msra.mxu0 0.0
        %387 = vmatprep.subr.mxu0 0.0
        %388 = vmatpush1.msra.mxu0 0.0
        %389 = vmatprep.subr.mxu0 0.0
        %390 = vmatpush1.msra.mxu0 0.0
        %391 = vmatprep.subr.mxu0 0.0
        %392 = vmatpush1.msra.mxu0 0.0
        %393 = vmatprep.subr.mxu0 0.0
        %394 = vmatpush1.msra.mxu0 0.0
        %395 = vmatprep.subr.mxu0 0.0
        %396 = vmatpush1.msra.mxu0 0.0
        %397 = vmatprep.subr.mxu0 0.0
        %398 = vmatpush1.msra.mxu0 0.0
        %399 = vmatprep.subr.mxu0 0.0
        %400 = vmatpush1.msra.mxu0 0.0
        %401 = vmatprep.subr.mxu0 0.0
        %402 = vmatpush1.msra.mxu0 0.0
        %403 = vmatprep.subr.mxu0 0.0
        %404 = vmatpush1.msra.mxu0 0.0
        %405 = vmatprep.mubr.f32.mxu0 0.0
        %v406 = vand.u32 %v334, 4294901760
        %v407 = vsub.f32 %v334, %v406
        %v408 = vand.u32 %v407, 4294901760
        %v409 = vsub.f32 %v407, %v408
        %v410 = vand.u32 %v409, 4294901760
        %411 = vmatmul.mubr.f32.gmra.mrb[0].mxu0 %v410
        %v412 = vpop.f32.mrb[0].mxu0
        %v413 = vadd.f32 0.0, %v412
        %v414 = vpop.f32.mrb[0].mxu0
        %415 = vdwg.mxu0
        %416 = vmatprep.subr.mxu0 0.0
        %v417 = vand.u32 %v338, 4294901760
        %v418 = vsub.f32 %v338, %v417
        %v419 = vand.u32 %v418, 4294901760
        %v420 = vsub.f32 %v418, %v419
        %v421 = vand.u32 %v420, 4294901760
        %422 = vmatpush1.msra.mxu0 %v421
        %423 = vmatprep.subr.mxu0 0.0
        %424 = vmatpush1.msra.mxu0 0.0
        %425 = vmatprep.subr.mxu0 0.0
        %426 = vmatpush1.msra.mxu0 0.0
        %427 = vmatprep.subr.mxu0 0.0
        %428 = vmatpush1.msra.mxu0 0.0
        %429 = vmatprep.subr.mxu0 0.0
        %430 = vmatpush1.msra.mxu0 0.0
        %431 = vmatprep.subr.mxu0 0.0
        %432 = vmatpush1.msra.mxu0 0.0
        %433 = vmatprep.subr.mxu0 0.0
        %434 = vmatpush1.msra.mxu0 0.0
        %435 = vmatprep.subr.mxu0 0.0
        %436 = vmatpush1.msra.mxu0 0.0
        %437 = vmatprep.subr.mxu0 0.0
        %438 = vmatpush1.msra.mxu0 0.0
        %439 = vmatprep.subr.mxu0 0.0
        %440 = vmatpush1.msra.mxu0 0.0
        %441 = vmatprep.subr.mxu0 0.0
        %442 = vmatpush1.msra.mxu0 0.0
        %443 = vmatprep.subr.mxu0 0.0
        %444 = vmatpush1.msra.mxu0 0.0
        %445 = vmatprep.subr.mxu0 0.0
        %446 = vmatpush1.msra.mxu0 0.0
        %447 = vmatprep.subr.mxu0 0.0
        %448 = vmatpush1.msra.mxu0 0.0
        %449 = vmatprep.subr.mxu0 0.0
        %450 = vmatpush1.msra.mxu0 0.0
        %451 = vmatprep.subr.mxu0 0.0
        %452 = vmatpush1.msra.mxu0 0.0
        %453 = vmatprep.subr.mxu0 0.0
        %454 = vmatpush1.msra.mxu0 0.0
        %455 = vmatprep.subr.mxu0 0.0
        %456 = vmatpush1.msra.mxu0 0.0
        %457 = vmatprep.subr.mxu0 0.0
        %458 = vmatpush1.msra.mxu0 0.0
        %459 = vmatprep.subr.mxu0 0.0
        %460 = vmatpush1.msra.mxu0 0.0
        %461 = vmatprep.subr.mxu0 0.0
        %462 = vmatpush1.msra.mxu0 0.0
        %463 = vmatprep.subr.mxu0 0.0
        %464 = vmatpush1.msra.mxu0 0.0
        %465 = vmatprep.subr.mxu0 0.0
        %466 = vmatpush1.msra.mxu0 0.0
        %467 = vmatprep.subr.mxu0 0.0
        %468 = vmatpush1.msra.mxu0 0.0
        %469 = vmatprep.subr.mxu0 0.0
        %470 = vmatpush1.msra.mxu0 0.0
        %471 = vmatprep.subr.mxu0 0.0
        %472 = vmatpush1.msra.mxu0 0.0
        %473 = vmatprep.subr.mxu0 0.0
        %474 = vmatpush1.msra.mxu0 0.0
        %475 = vmatprep.subr.mxu0 0.0
        %476 = vmatpush1.msra.mxu0 0.0
        %477 = vmatprep.subr.mxu0 0.0
        %478 = vmatpush1.msra.mxu0 0.0
        %479 = vmatprep.subr.mxu0 0.0
        %480 = vmatpush1.msra.mxu0 0.0
        %481 = vmatprep.subr.mxu0 0.0
        %482 = vmatpush1.msra.mxu0 0.0
        %483 = vmatprep.subr.mxu0 0.0
        %484 = vmatpush1.msra.mxu0 0.0
        %485 = vmatprep.mubr.f32.mxu0 0.0
        %v486 = vand.u32 %v334, 4294901760
        %487 = vmatmul.mubr.f32.gmra.mrb[0].mxu0 %v486
        %v488 = vpop.f32.mrb[0].mxu0
        %v489 = vadd.f32 %v413, %v488
        %v490 = vpop.f32.mrb[0].mxu0
        %491 = vdwg.mxu0
        %492 = vmatprep.subr.mxu0 0.0
        %v493 = vand.u32 %v338, 4294901760
        %v494 = vsub.f32 %v338, %v493
        %495 = vmatpush1.msra.mxu0 %v494
        %496 = vmatprep.subr.mxu0 0.0
        %497 = vmatpush1.msra.mxu0 0.0
        %498 = vmatprep.subr.mxu0 0.0
        %499 = vmatpush1.msra.mxu0 0.0
        %500 = vmatprep.subr.mxu0 0.0
        %501 = vmatpush1.msra.mxu0 0.0
        %502 = vmatprep.subr.mxu0 0.0
        %503 = vmatpush1.msra.mxu0 0.0
        %504 = vmatprep.subr.mxu0 0.0
        %505 = vmatpush1.msra.mxu0 0.0
        %506 = vmatprep.subr.mxu0 0.0
        %507 = vmatpush1.msra.mxu0 0.0
        %508 = vmatprep.subr.mxu0 0.0
        %509 = vmatpush1.msra.mxu0 0.0
        %510 = vmatprep.subr.mxu0 0.0
        %511 = vmatpush1.msra.mxu0 0.0
        %512 = vmatprep.subr.mxu0 0.0
        %513 = vmatpush1.msra.mxu0 0.0
        %514 = vmatprep.subr.mxu0 0.0
        %515 = vmatpush1.msra.mxu0 0.0
        %516 = vmatprep.subr.mxu0 0.0
        %517 = vmatpush1.msra.mxu0 0.0
        %518 = vmatprep.subr.mxu0 0.0
        %519 = vmatpush1.msra.mxu0 0.0
        %520 = vmatprep.subr.mxu0 0.0
        %521 = vmatpush1.msra.mxu0 0.0
        %522 = vmatprep.subr.mxu0 0.0
        %523 = vmatpush1.msra.mxu0 0.0
        %524 = vmatprep.subr.mxu0 0.0
        %525 = vmatpush1.msra.mxu0 0.0
        %526 = vmatprep.subr.mxu0 0.0
        %527 = vmatpush1.msra.mxu0 0.0
        %528 = vmatprep.subr.mxu0 0.0
        %529 = vmatpush1.msra.mxu0 0.0
        %530 = vmatprep.subr.mxu0 0.0
        %531 = vmatpush1.msra.mxu0 0.0
        %532 = vmatprep.subr.mxu0 0.0
        %533 = vmatpush1.msra.mxu0 0.0
        %534 = vmatprep.subr.mxu0 0.0
        %535 = vmatpush1.msra.mxu0 0.0
        %536 = vmatprep.subr.mxu0 0.0
        %537 = vmatpush1.msra.mxu0 0.0
        %538 = vmatprep.subr.mxu0 0.0
        %539 = vmatpush1.msra.mxu0 0.0
        %540 = vmatprep.subr.mxu0 0.0
        %541 = vmatpush1.msra.mxu0 0.0
        %542 = vmatprep.subr.mxu0 0.0
        %543 = vmatpush1.msra.mxu0 0.0
        %544 = vmatprep.subr.mxu0 0.0
        %545 = vmatpush1.msra.mxu0 0.0
        %546 = vmatprep.subr.mxu0 0.0
        %547 = vmatpush1.msra.mxu0 0.0
        %548 = vmatprep.subr.mxu0 0.0
        %549 = vmatpush1.msra.mxu0 0.0
        %550 = vmatprep.subr.mxu0 0.0
        %551 = vmatpush1.msra.mxu0 0.0
        %552 = vmatprep.subr.mxu0 0.0
        %553 = vmatpush1.msra.mxu0 0.0
        %554 = vmatprep.subr.mxu0 0.0
        %555 = vmatpush1.msra.mxu0 0.0
        %556 = vmatprep.subr.mxu0 0.0
        %557 = vmatpush1.msra.mxu0 0.0
        %558 = vmatprep.mubr.f32.mxu0 0.0
        %v559 = vand.u32 %v334, 4294901760
        %v560 = vsub.f32 %v334, %v559
        %561 = vmatmul.mubr.f32.gmra.mrb[0].mxu0 %v560
        %v562 = vpop.f32.mrb[0].mxu0
        %v563 = vadd.f32 %v489, %v562
        %v564 = vpop.f32.mrb[0].mxu0
        %565 = vdwg.mxu0
        %566 = vmatprep.subr.mxu0 0.0
        %v567 = vand.u32 %v338, 4294901760
        %568 = vmatpush1.msra.mxu0 %v567
        %569 = vmatprep.subr.mxu0 0.0
        %570 = vmatpush1.msra.mxu0 0.0
        %571 = vmatprep.subr.mxu0 0.0
        %572 = vmatpush1.msra.mxu0 0.0
        %573 = vmatprep.subr.mxu0 0.0
        %574 = vmatpush1.msra.mxu0 0.0
        %575 = vmatprep.subr.mxu0 0.0
        %576 = vmatpush1.msra.mxu0 0.0
        %577 = vmatprep.subr.mxu0 0.0
        %578 = vmatpush1.msra.mxu0 0.0
        %579 = vmatprep.subr.mxu0 0.0
        %580 = vmatpush1.msra.mxu0 0.0
        %581 = vmatprep.subr.mxu0 0.0
        %582 = vmatpush1.msra.mxu0 0.0
        %583 = vmatprep.subr.mxu0 0.0
        %584 = vmatpush1.msra.mxu0 0.0
        %585 = vmatprep.subr.mxu0 0.0
        %586 = vmatpush1.msra.mxu0 0.0
        %587 = vmatprep.subr.mxu0 0.0
        %588 = vmatpush1.msra.mxu0 0.0
        %589 = vmatprep.subr.mxu0 0.0
        %590 = vmatpush1.msra.mxu0 0.0
        %591 = vmatprep.subr.mxu0 0.0
        %592 = vmatpush1.msra.mxu0 0.0
        %593 = vmatprep.subr.mxu0 0.0
        %594 = vmatpush1.msra.mxu0 0.0
        %595 = vmatprep.subr.mxu0 0.0
        %596 = vmatpush1.msra.mxu0 0.0
        %597 = vmatprep.subr.mxu0 0.0
        %598 = vmatpush1.msra.mxu0 0.0
        %599 = vmatprep.subr.mxu0 0.0
        %600 = vmatpush1.msra.mxu0 0.0
        %601 = vmatprep.subr.mxu0 0.0
        %602 = vmatpush1.msra.mxu0 0.0
        %603 = vmatprep.subr.mxu0 0.0
        %604 = vmatpush1.msra.mxu0 0.0
        %605 = vmatprep.subr.mxu0 0.0
        %606 = vmatpush1.msra.mxu0 0.0
        %607 = vmatprep.subr.mxu0 0.0
        %608 = vmatpush1.msra.mxu0 0.0
        %609 = vmatprep.subr.mxu0 0.0
        %610 = vmatpush1.msra.mxu0 0.0
        %611 = vmatprep.subr.mxu0 0.0
        %612 = vmatpush1.msra.mxu0 0.0
        %613 = vmatprep.subr.mxu0 0.0
        %614 = vmatpush1.msra.mxu0 0.0
        %615 = vmatprep.subr.mxu0 0.0
        %616 = vmatpush1.msra.mxu0 0.0
        %617 = vmatprep.subr.mxu0 0.0
        %618 = vmatpush1.msra.mxu0 0.0
        %619 = vmatprep.subr.mxu0 0.0
        %620 = vmatpush1.msra.mxu0 0.0
        %621 = vmatprep.subr.mxu0 0.0
        %622 = vmatpush1.msra.mxu0 0.0
        %623 = vmatprep.subr.mxu0 0.0
        %624 = vmatpush1.msra.mxu0 0.0
        %625 = vmatprep.subr.mxu0 0.0
        %626 = vmatpush1.msra.mxu0 0.0
        %627 = vmatprep.subr.mxu0 0.0
        %628 = vmatpush1.msra.mxu0 0.0
        %629 = vmatprep.subr.mxu0 0.0
        %630 = vmatpush1.msra.mxu0 0.0
        %631 = vmatprep.mubr.f32.mxu0 0.0
        %v632 = vand.u32 %v334, 4294901760
        %v633 = vsub.f32 %v334, %v632
        %v634 = vand.u32 %v633, 4294901760
        %635 = vmatmul.mubr.f32.gmra.mrb[0].mxu0 %v634
        %v636 = vpop.f32.mrb[0].mxu0
        %v637 = vadd.f32 %v563, %v636
        %v638 = vpop.f32.mrb[0].mxu0
        %639 = vdwg.mxu0
        %640 = vmatprep.subr.mxu0 0.0
        %v641 = vand.u32 %v338, 4294901760
        %v642 = vsub.f32 %v338, %v641
        %v643 = vand.u32 %v642, 4294901760
        %644 = vmatpush1.msra.mxu0 %v643
        %645 = vmatprep.subr.mxu0 0.0
        %646 = vmatpush1.msra.mxu0 0.0
        %647 = vmatprep.subr.mxu0 0.0
        %648 = vmatpush1.msra.mxu0 0.0
        %649 = vmatprep.subr.mxu0 0.0
        %650 = vmatpush1.msra.mxu0 0.0
        %651 = vmatprep.subr.mxu0 0.0
        %652 = vmatpush1.msra.mxu0 0.0
        %653 = vmatprep.subr.mxu0 0.0
        %654 = vmatpush1.msra.mxu0 0.0
        %655 = vmatprep.subr.mxu0 0.0
        %656 = vmatpush1.msra.mxu0 0.0
        %657 = vmatprep.subr.mxu0 0.0
        %658 = vmatpush1.msra.mxu0 0.0
        %659 = vmatprep.subr.mxu0 0.0
        %660 = vmatpush1.msra.mxu0 0.0
        %661 = vmatprep.subr.mxu0 0.0
        %662 = vmatpush1.msra.mxu0 0.0
        %663 = vmatprep.subr.mxu0 0.0
        %664 = vmatpush1.msra.mxu0 0.0
        %665 = vmatprep.subr.mxu0 0.0
        %666 = vmatpush1.msra.mxu0 0.0
        %667 = vmatprep.subr.mxu0 0.0
        %668 = vmatpush1.msra.mxu0 0.0
        %669 = vmatprep.subr.mxu0 0.0
        %670 = vmatpush1.msra.mxu0 0.0
        %671 = vmatprep.subr.mxu0 0.0
        %672 = vmatpush1.msra.mxu0 0.0
        %673 = vmatprep.subr.mxu0 0.0
        %674 = vmatpush1.msra.mxu0 0.0
        %675 = vmatprep.subr.mxu0 0.0
        %676 = vmatpush1.msra.mxu0 0.0
        %677 = vmatprep.subr.mxu0 0.0
        %678 = vmatpush1.msra.mxu0 0.0
        %679 = vmatprep.subr.mxu0 0.0
        %680 = vmatpush1.msra.mxu0 0.0
        %681 = vmatprep.subr.mxu0 0.0
        %682 = vmatpush1.msra.mxu0 0.0
        %683 = vmatprep.subr.mxu0 0.0
        %684 = vmatpush1.msra.mxu0 0.0
        %685 = vmatprep.subr.mxu0 0.0
        %686 = vmatpush1.msra.mxu0 0.0
        %687 = vmatprep.subr.mxu0 0.0
        %688 = vmatpush1.msra.mxu0 0.0
        %689 = vmatprep.subr.mxu0 0.0
        %690 = vmatpush1.msra.mxu0 0.0
        %691 = vmatprep.subr.mxu0 0.0
        %692 = vmatpush1.msra.mxu0 0.0
        %693 = vmatprep.subr.mxu0 0.0
        %694 = vmatpush1.msra.mxu0 0.0
        %695 = vmatprep.subr.mxu0 0.0
        %696 = vmatpush1.msra.mxu0 0.0
        %697 = vmatprep.subr.mxu0 0.0
        %698 = vmatpush1.msra.mxu0 0.0
        %699 = vmatprep.subr.mxu0 0.0
        %700 = vmatpush1.msra.mxu0 0.0
        %701 = vmatprep.subr.mxu0 0.0
        %702 = vmatpush1.msra.mxu0 0.0
        %703 = vmatprep.subr.mxu0 0.0
        %704 = vmatpush1.msra.mxu0 0.0
        %705 = vmatprep.subr.mxu0 0.0
        %706 = vmatpush1.msra.mxu0 0.0
        %707 = vmatprep.mubr.f32.mxu0 0.0
        %v708 = vand.u32 %v334, 4294901760
        %709 = vmatmul.mubr.f32.gmra.mrb[0].mxu0 %v708
        %v710 = vpop.f32.mrb[0].mxu0
        %v711 = vadd.f32 %v637, %v710
        %v712 = vpop.f32.mrb[0].mxu0
        %713 = vdwg.mxu0
        %714 = vmatprep.subr.mxu0 0.0
        %v715 = vand.u32 %v338, 4294901760
        %716 = vmatpush1.msra.mxu0 %v715
        %717 = vmatprep.subr.mxu0 0.0
        %718 = vmatpush1.msra.mxu0 0.0
        %719 = vmatprep.subr.mxu0 0.0
        %720 = vmatpush1.msra.mxu0 0.0
        %721 = vmatprep.subr.mxu0 0.0
        %722 = vmatpush1.msra.mxu0 0.0
        %723 = vmatprep.subr.mxu0 0.0
        %724 = vmatpush1.msra.mxu0 0.0
        %725 = vmatprep.subr.mxu0 0.0
        %726 = vmatpush1.msra.mxu0 0.0
        %727 = vmatprep.subr.mxu0 0.0
        %728 = vmatpush1.msra.mxu0 0.0
        %729 = vmatprep.subr.mxu0 0.0
        %730 = vmatpush1.msra.mxu0 0.0
        %731 = vmatprep.subr.mxu0 0.0
        %732 = vmatpush1.msra.mxu0 0.0
        %733 = vmatprep.subr.mxu0 0.0
        %734 = vmatpush1.msra.mxu0 0.0
        %735 = vmatprep.subr.mxu0 0.0
        %736 = vmatpush1.msra.mxu0 0.0
        %737 = vmatprep.subr.mxu0 0.0
        %738 = vmatpush1.msra.mxu0 0.0
        %739 = vmatprep.subr.mxu0 0.0
        %740 = vmatpush1.msra.mxu0 0.0
        %741 = vmatprep.subr.mxu0 0.0
        %742 = vmatpush1.msra.mxu0 0.0
        %743 = vmatprep.subr.mxu0 0.0
        %744 = vmatpush1.msra.mxu0 0.0
        %745 = vmatprep.subr.mxu0 0.0
        %746 = vmatpush1.msra.mxu0 0.0
        %747 = vmatprep.subr.mxu0 0.0
        %748 = vmatpush1.msra.mxu0 0.0
        %749 = vmatprep.subr.mxu0 0.0
        %750 = vmatpush1.msra.mxu0 0.0
        %751 = vmatprep.subr.mxu0 0.0
        %752 = vmatpush1.msra.mxu0 0.0
        %753 = vmatprep.subr.mxu0 0.0
        %754 = vmatpush1.msra.mxu0 0.0
        %755 = vmatprep.subr.mxu0 0.0
        %756 = vmatpush1.msra.mxu0 0.0
        %757 = vmatprep.subr.mxu0 0.0
        %758 = vmatpush1.msra.mxu0 0.0
        %759 = vmatprep.subr.mxu0 0.0
        %760 = vmatpush1.msra.mxu0 0.0
        %761 = vmatprep.subr.mxu0 0.0
        %762 = vmatpush1.msra.mxu0 0.0
        %763 = vmatprep.subr.mxu0 0.0
        %764 = vmatpush1.msra.mxu0 0.0
        %765 = vmatprep.subr.mxu0 0.0
        %766 = vmatpush1.msra.mxu0 0.0
        %767 = vmatprep.subr.mxu0 0.0
        %768 = vmatpush1.msra.mxu0 0.0
        %769 = vmatprep.subr.mxu0 0.0
        %770 = vmatpush1.msra.mxu0 0.0
        %771 = vmatprep.subr.mxu0 0.0
        %772 = vmatpush1.msra.mxu0 0.0
        %773 = vmatprep.subr.mxu0 0.0
        %774 = vmatpush1.msra.mxu0 0.0
        %775 = vmatprep.subr.mxu0 0.0
        %776 = vmatpush1.msra.mxu0 0.0
        %777 = vmatprep.subr.mxu0 0.0
        %778 = vmatpush1.msra.mxu0 0.0
        %779 = vmatprep.mubr.f32.mxu0 0.0
        %v780 = vand.u32 %v334, 4294901760
        %781 = vmatmul.mubr.f32.gmra.mrb[0].mxu0 %v780
        %v782 = vpop.f32.mrb[0].mxu0
        %v783 = vadd.f32 %v711, %v782
        %v784 = vpop.f32.mrb[0].mxu0
        %785 = vdwg.mxu0
        %vm786 = vcmask 31744
        %v788 = vsel %vm786, %v328, 0
        %vm790 = vcmask 1043456
        %v792 = vsel %vm790, %v329, 0
        %794 = vmatprep.subr.mxu0 0.0
        %v795 = vand.u32 %v792, 4294901760
        %796 = vmatpush1.msra.mxu0 %v795
        %797 = vmatprep.subr.mxu0 0.0
        %798 = vmatpush1.msra.mxu0 0.0
        %799 = vmatprep.subr.mxu0 0.0
        %800 = vmatpush1.msra.mxu0 0.0
        %801 = vmatprep.subr.mxu0 0.0
        %802 = vmatpush1.msra.mxu0 0.0
        %803 = vmatprep.subr.mxu0 0.0
        %804 = vmatpush1.msra.mxu0 0.0
        %805 = vmatprep.subr.mxu0 0.0
        %806 = vmatpush1.msra.mxu0 0.0
        %807 = vmatprep.subr.mxu0 0.0
        %808 = vmatpush1.msra.mxu0 0.0
        %809 = vmatprep.subr.mxu0 0.0
        %810 = vmatpush1.msra.mxu0 0.0
        %811 = vmatprep.subr.mxu0 0.0
        %812 = vmatpush1.msra.mxu0 0.0
        %813 = vmatprep.subr.mxu0 0.0
        %814 = vmatpush1.msra.mxu0 0.0
        %815 = vmatprep.subr.mxu0 0.0
        %816 = vmatpush1.msra.mxu0 0.0
        %817 = vmatprep.subr.mxu0 0.0
        %818 = vmatpush1.msra.mxu0 0.0
        %819 = vmatprep.subr.mxu0 0.0
        %820 = vmatpush1.msra.mxu0 0.0
        %821 = vmatprep.subr.mxu0 0.0
        %822 = vmatpush1.msra.mxu0 0.0
        %823 = vmatprep.subr.mxu0 0.0
        %824 = vmatpush1.msra.mxu0 0.0
        %825 = vmatprep.subr.mxu0 0.0
        %826 = vmatpush1.msra.mxu0 0.0
        %827 = vmatprep.subr.mxu0 0.0
        %828 = vmatpush1.msra.mxu0 0.0
        %829 = vmatprep.subr.mxu0 0.0
        %830 = vmatpush1.msra.mxu0 0.0
        %831 = vmatprep.subr.mxu0 0.0
        %832 = vmatpush1.msra.mxu0 0.0
        %833 = vmatprep.subr.mxu0 0.0
        %834 = vmatpush1.msra.mxu0 0.0
        %835 = vmatprep.subr.mxu0 0.0
        %836 = vmatpush1.msra.mxu0 0.0
        %837 = vmatprep.subr.mxu0 0.0
        %838 = vmatpush1.msra.mxu0 0.0
        %839 = vmatprep.subr.mxu0 0.0
        %840 = vmatpush1.msra.mxu0 0.0
        %841 = vmatprep.subr.mxu0 0.0
        %842 = vmatpush1.msra.mxu0 0.0
        %843 = vmatprep.subr.mxu0 0.0
        %844 = vmatpush1.msra.mxu0 0.0
        %845 = vmatprep.subr.mxu0 0.0
        %846 = vmatpush1.msra.mxu0 0.0
        %847 = vmatprep.subr.mxu0 0.0
        %848 = vmatpush1.msra.mxu0 0.0
        %849 = vmatprep.subr.mxu0 0.0
        %850 = vmatpush1.msra.mxu0 0.0
        %851 = vmatprep.subr.mxu0 0.0
        %852 = vmatpush1.msra.mxu0 0.0
        %853 = vmatprep.subr.mxu0 0.0
        %854 = vmatpush1.msra.mxu0 0.0
        %855 = vmatprep.subr.mxu0 0.0
        %856 = vmatpush1.msra.mxu0 0.0
        %857 = vmatprep.subr.mxu0 0.0
        %858 = vmatpush1.msra.mxu0 0.0
        %859 = vmatprep.mubr.f32.mxu0 0.0
        %v860 = vand.u32 %v788, 4294901760
        %v861 = vsub.f32 %v788, %v860
        %v862 = vand.u32 %v861, 4294901760
        %v863 = vsub.f32 %v861, %v862
        %v864 = vand.u32 %v863, 4294901760
        %865 = vmatmul.mubr.f32.gmra.mrb[0].mxu0 %v864
        %v866 = vpop.f32.mrb[0].mxu0
        %v867 = vadd.f32 %v783, %v866
        %v868 = vpop.f32.mrb[0].mxu0
        %869 = vdwg.mxu0
        %870 = vmatprep.subr.mxu0 0.0
        %v871 = vand.u32 %v792, 4294901760
        %v872 = vsub.f32 %v792, %v871
        %v873 = vand.u32 %v872, 4294901760
        %v874 = vsub.f32 %v872, %v873
        %v875 = vand.u32 %v874, 4294901760
        %876 = vmatpush1.msra.mxu0 %v875
        %877 = vmatprep.subr.mxu0 0.0
        %878 = vmatpush1.msra.mxu0 0.0
        %879 = vmatprep.subr.mxu0 0.0
        %880 = vmatpush1.msra.mxu0 0.0
        %881 = vmatprep.subr.mxu0 0.0
        %882 = vmatpush1.msra.mxu0 0.0
        %883 = vmatprep.subr.mxu0 0.0
        %884 = vmatpush1.msra.mxu0 0.0
        %885 = vmatprep.subr.mxu0 0.0
        %886 = vmatpush1.msra.mxu0 0.0
        %887 = vmatprep.subr.mxu0 0.0
        %888 = vmatpush1.msra.mxu0 0.0
        %889 = vmatprep.subr.mxu0 0.0
        %890 = vmatpush1.msra.mxu0 0.0
        %891 = vmatprep.subr.mxu0 0.0
        %892 = vmatpush1.msra.mxu0 0.0
        %893 = vmatprep.subr.mxu0 0.0
        %894 = vmatpush1.msra.mxu0 0.0
        %895 = vmatprep.subr.mxu0 0.0
        %896 = vmatpush1.msra.mxu0 0.0
        %897 = vmatprep.subr.mxu0 0.0
        %898 = vmatpush1.msra.mxu0 0.0
        %899 = vmatprep.subr.mxu0 0.0
        %900 = vmatpush1.msra.mxu0 0.0
        %901 = vmatprep.subr.mxu0 0.0
        %902 = vmatpush1.msra.mxu0 0.0
        %903 = vmatprep.subr.mxu0 0.0
        %904 = vmatpush1.msra.mxu0 0.0
        %905 = vmatprep.subr.mxu0 0.0
        %906 = vmatpush1.msra.mxu0 0.0
        %907 = vmatprep.subr.mxu0 0.0
        %908 = vmatpush1.msra.mxu0 0.0
        %909 = vmatprep.subr.mxu0 0.0
        %910 = vmatpush1.msra.mxu0 0.0
        %911 = vmatprep.subr.mxu0 0.0
        %912 = vmatpush1.msra.mxu0 0.0
        %913 = vmatprep.subr.mxu0 0.0
        %914 = vmatpush1.msra.mxu0 0.0
        %915 = vmatprep.subr.mxu0 0.0
        %916 = vmatpush1.msra.mxu0 0.0
        %917 = vmatprep.subr.mxu0 0.0
        %918 = vmatpush1.msra.mxu0 0.0
        %919 = vmatprep.subr.mxu0 0.0
        %920 = vmatpush1.msra.mxu0 0.0
        %921 = vmatprep.subr.mxu0 0.0
        %922 = vmatpush1.msra.mxu0 0.0
        %923 = vmatprep.subr.mxu0 0.0
        %924 = vmatpush1.msra.mxu0 0.0
        %925 = vmatprep.subr.mxu0 0.0
        %926 = vmatpush1.msra.mxu0 0.0
        %927 = vmatprep.subr.mxu0 0.0
        %928 = vmatpush1.msra.mxu0 0.0
        %929 = vmatprep.subr.mxu0 0.0
        %930 = vmatpush1.msra.mxu0 0.0
        %931 = vmatprep.subr.mxu0 0.0
        %932 = vmatpush1.msra.mxu0 0.0
        %933 = vmatprep.subr.mxu0 0.0
        %934 = vmatpush1.msra.mxu0 0.0
        %935 = vmatprep.subr.mxu0 0.0
        %936 = vmatpush1.msra.mxu0 0.0
        %937 = vmatprep.subr.mxu0 0.0
        %938 = vmatpush1.msra.mxu0 0.0
        %939 = vmatprep.mubr.f32.mxu0 0.0
        %v940 = vand.u32 %v788, 4294901760
        %941 = vmatmul.mubr.f32.gmra.mrb[0].mxu0 %v940
        %v942 = vpop.f32.mrb[0].mxu0
        %v943 = vadd.f32 %v867, %v942
        %v944 = vpop.f32.mrb[0].mxu0
        %945 = vdwg.mxu0
        %946 = vmatprep.subr.mxu0 0.0
        %v947 = vand.u32 %v792, 4294901760
        %v948 = vsub.f32 %v792, %v947
        %949 = vmatpush1.msra.mxu0 %v948
        %950 = vmatprep.subr.mxu0 0.0
        %951 = vmatpush1.msra.mxu0 0.0
        %952 = vmatprep.subr.mxu0 0.0
        %953 = vmatpush1.msra.mxu0 0.0
        %954 = vmatprep.subr.mxu0 0.0
        %955 = vmatpush1.msra.mxu0 0.0
        %956 = vmatprep.subr.mxu0 0.0
        %957 = vmatpush1.msra.mxu0 0.0
        %958 = vmatprep.subr.mxu0 0.0
        %959 = vmatpush1.msra.mxu0 0.0
        %960 = vmatprep.subr.mxu0 0.0
        %961 = vmatpush1.msra.mxu0 0.0
        %962 = vmatprep.subr.mxu0 0.0
        %963 = vmatpush1.msra.mxu0 0.0
        %964 = vmatprep.subr.mxu0 0.0
        %965 = vmatpush1.msra.mxu0 0.0
        %966 = vmatprep.subr.mxu0 0.0
        %967 = vmatpush1.msra.mxu0 0.0
        %968 = vmatprep.subr.mxu0 0.0
        %969 = vmatpush1.msra.mxu0 0.0
        %970 = vmatprep.subr.mxu0 0.0
        %971 = vmatpush1.msra.mxu0 0.0
        %972 = vmatprep.subr.mxu0 0.0
        %973 = vmatpush1.msra.mxu0 0.0
        %974 = vmatprep.subr.mxu0 0.0
        %975 = vmatpush1.msra.mxu0 0.0
        %976 = vmatprep.subr.mxu0 0.0
        %977 = vmatpush1.msra.mxu0 0.0
        %978 = vmatprep.subr.mxu0 0.0
        %979 = vmatpush1.msra.mxu0 0.0
        %980 = vmatprep.subr.mxu0 0.0
        %981 = vmatpush1.msra.mxu0 0.0
        %982 = vmatprep.subr.mxu0 0.0
        %983 = vmatpush1.msra.mxu0 0.0
        %984 = vmatprep.subr.mxu0 0.0
        %985 = vmatpush1.msra.mxu0 0.0
        %986 = vmatprep.subr.mxu0 0.0
        %987 = vmatpush1.msra.mxu0 0.0
        %988 = vmatprep.subr.mxu0 0.0
        %989 = vmatpush1.msra.mxu0 0.0
        %990 = vmatprep.subr.mxu0 0.0
        %991 = vmatpush1.msra.mxu0 0.0
        %992 = vmatprep.subr.mxu0 0.0
        %993 = vmatpush1.msra.mxu0 0.0
        %994 = vmatprep.subr.mxu0 0.0
        %995 = vmatpush1.msra.mxu0 0.0
        %996 = vmatprep.subr.mxu0 0.0
        %997 = vmatpush1.msra.mxu0 0.0
        %998 = vmatprep.subr.mxu0 0.0
        %999 = vmatpush1.msra.mxu0 0.0
        %1000 = vmatprep.subr.mxu0 0.0
        %1001 = vmatpush1.msra.mxu0 0.0
        %1002 = vmatprep.subr.mxu0 0.0
        %1003 = vmatpush1.msra.mxu0 0.0
        %1004 = vmatprep.subr.mxu0 0.0
        %1005 = vmatpush1.msra.mxu0 0.0
        %1006 = vmatprep.subr.mxu0 0.0
        %1007 = vmatpush1.msra.mxu0 0.0
        %1008 = vmatprep.subr.mxu0 0.0
        %1009 = vmatpush1.msra.mxu0 0.0
        %1010 = vmatprep.subr.mxu0 0.0
        %1011 = vmatpush1.msra.mxu0 0.0
        %1012 = vmatprep.mubr.f32.mxu0 0.0
        %v1013 = vand.u32 %v788, 4294901760
        %v1014 = vsub.f32 %v788, %v1013
        %1015 = vmatmul.mubr.f32.gmra.mrb[0].mxu0 %v1014
        %v1016 = vpop.f32.mrb[0].mxu0
        %v1017 = vadd.f32 %v943, %v1016
        %v1018 = vpop.f32.mrb[0].mxu0
        %1019 = vdwg.mxu0
        %1020 = vmatprep.subr.mxu0 0.0
        %v1021 = vand.u32 %v792, 4294901760
        %1022 = vmatpush1.msra.mxu0 %v1021
        %1023 = vmatprep.subr.mxu0 0.0
        %1024 = vmatpush1.msra.mxu0 0.0
        %1025 = vmatprep.subr.mxu0 0.0
        %1026 = vmatpush1.msra.mxu0 0.0
        %1027 = vmatprep.subr.mxu0 0.0
        %1028 = vmatpush1.msra.mxu0 0.0
        %1029 = vmatprep.subr.mxu0 0.0
        %1030 = vmatpush1.msra.mxu0 0.0
        %1031 = vmatprep.subr.mxu0 0.0
        %1032 = vmatpush1.msra.mxu0 0.0
        %1033 = vmatprep.subr.mxu0 0.0
        %1034 = vmatpush1.msra.mxu0 0.0
        %1035 = vmatprep.subr.mxu0 0.0
        %1036 = vmatpush1.msra.mxu0 0.0
        %1037 = vmatprep.subr.mxu0 0.0
        %1038 = vmatpush1.msra.mxu0 0.0
        %1039 = vmatprep.subr.mxu0 0.0
        %1040 = vmatpush1.msra.mxu0 0.0
        %1041 = vmatprep.subr.mxu0 0.0
        %1042 = vmatpush1.msra.mxu0 0.0
        %1043 = vmatprep.subr.mxu0 0.0
        %1044 = vmatpush1.msra.mxu0 0.0
        %1045 = vmatprep.subr.mxu0 0.0
        %1046 = vmatpush1.msra.mxu0 0.0
        %1047 = vmatprep.subr.mxu0 0.0
        %1048 = vmatpush1.msra.mxu0 0.0
        %1049 = vmatprep.subr.mxu0 0.0
        %1050 = vmatpush1.msra.mxu0 0.0
        %1051 = vmatprep.subr.mxu0 0.0
        %1052 = vmatpush1.msra.mxu0 0.0
        %1053 = vmatprep.subr.mxu0 0.0
        %1054 = vmatpush1.msra.mxu0 0.0
        %1055 = vmatprep.subr.mxu0 0.0
        %1056 = vmatpush1.msra.mxu0 0.0
        %1057 = vmatprep.subr.mxu0 0.0
        %1058 = vmatpush1.msra.mxu0 0.0
        %1059 = vmatprep.subr.mxu0 0.0
        %1060 = vmatpush1.msra.mxu0 0.0
        %1061 = vmatprep.subr.mxu0 0.0
        %1062 = vmatpush1.msra.mxu0 0.0
        %1063 = vmatprep.subr.mxu0 0.0
        %1064 = vmatpush1.msra.mxu0 0.0
        %1065 = vmatprep.subr.mxu0 0.0
        %1066 = vmatpush1.msra.mxu0 0.0
        %1067 = vmatprep.subr.mxu0 0.0
        %1068 = vmatpush1.msra.mxu0 0.0
        %1069 = vmatprep.subr.mxu0 0.0
        %1070 = vmatpush1.msra.mxu0 0.0
        %1071 = vmatprep.subr.mxu0 0.0
        %1072 = vmatpush1.msra.mxu0 0.0
        %1073 = vmatprep.subr.mxu0 0.0
        %1074 = vmatpush1.msra.mxu0 0.0
        %1075 = vmatprep.subr.mxu0 0.0
        %1076 = vmatpush1.msra.mxu0 0.0
        %1077 = vmatprep.subr.mxu0 0.0
        %1078 = vmatpush1.msra.mxu0 0.0
        %1079 = vmatprep.subr.mxu0 0.0
        %1080 = vmatpush1.msra.mxu0 0.0
        %1081 = vmatprep.subr.mxu0 0.0
        %1082 = vmatpush1.msra.mxu0 0.0
        %1083 = vmatprep.subr.mxu0 0.0
        %1084 = vmatpush1.msra.mxu0 0.0
        %1085 = vmatprep.mubr.f32.mxu0 0.0
        %v1086 = vand.u32 %v788, 4294901760
        %v1087 = vsub.f32 %v788, %v1086
        %v1088 = vand.u32 %v1087, 4294901760
        %1089 = vmatmul.mubr.f32.gmra.mrb[0].mxu0 %v1088
        %v1090 = vpop.f32.mrb[0].mxu0
        %v1091 = vadd.f32 %v1017, %v1090
        %v1092 = vpop.f32.mrb[0].mxu0
        %1093 = vdwg.mxu0
        %1094 = vmatprep.subr.mxu0 0.0
        %v1095 = vand.u32 %v792, 4294901760
        %v1096 = vsub.f32 %v792, %v1095
        %v1097 = vand.u32 %v1096, 4294901760
        %1098 = vmatpush1.msra.mxu0 %v1097
        %1099 = vmatprep.subr.mxu0 0.0
        %1100 = vmatpush1.msra.mxu0 0.0
        %1101 = vmatprep.subr.mxu0 0.0
        %1102 = vmatpush1.msra.mxu0 0.0
        %1103 = vmatprep.subr.mxu0 0.0
        %1104 = vmatpush1.msra.mxu0 0.0
        %1105 = vmatprep.subr.mxu0 0.0
        %1106 = vmatpush1.msra.mxu0 0.0
        %1107 = vmatprep.subr.mxu0 0.0
        %1108 = vmatpush1.msra.mxu0 0.0
        %1109 = vmatprep.subr.mxu0 0.0
        %1110 = vmatpush1.msra.mxu0 0.0
        %1111 = vmatprep.subr.mxu0 0.0
        %1112 = vmatpush1.msra.mxu0 0.0
        %1113 = vmatprep.subr.mxu0 0.0
        %1114 = vmatpush1.msra.mxu0 0.0
        %1115 = vmatprep.subr.mxu0 0.0
        %1116 = vmatpush1.msra.mxu0 0.0
        %1117 = vmatprep.subr.mxu0 0.0
        %1118 = vmatpush1.msra.mxu0 0.0
        %1119 = vmatprep.subr.mxu0 0.0
        %1120 = vmatpush1.msra.mxu0 0.0
        %1121 = vmatprep.subr.mxu0 0.0
        %1122 = vmatpush1.msra.mxu0 0.0
        %1123 = vmatprep.subr.mxu0 0.0
        %1124 = vmatpush1.msra.mxu0 0.0
        %1125 = vmatprep.subr.mxu0 0.0
        %1126 = vmatpush1.msra.mxu0 0.0
        %1127 = vmatprep.subr.mxu0 0.0
        %1128 = vmatpush1.msra.mxu0 0.0
        %1129 = vmatprep.subr.mxu0 0.0
        %1130 = vmatpush1.msra.mxu0 0.0
        %1131 = vmatprep.subr.mxu0 0.0
        %1132 = vmatpush1.msra.mxu0 0.0
        %1133 = vmatprep.subr.mxu0 0.0
        %1134 = vmatpush1.msra.mxu0 0.0
        %1135 = vmatprep.subr.mxu0 0.0
        %1136 = vmatpush1.msra.mxu0 0.0
        %1137 = vmatprep.subr.mxu0 0.0
        %1138 = vmatpush1.msra.mxu0 0.0
        %1139 = vmatprep.subr.mxu0 0.0
        %1140 = vmatpush1.msra.mxu0 0.0
        %1141 = vmatprep.subr.mxu0 0.0
        %1142 = vmatpush1.msra.mxu0 0.0
        %1143 = vmatprep.subr.mxu0 0.0
        %1144 = vmatpush1.msra.mxu0 0.0
        %1145 = vmatprep.subr.mxu0 0.0
        %1146 = vmatpush1.msra.mxu0 0.0
        %1147 = vmatprep.subr.mxu0 0.0
        %1148 = vmatpush1.msra.mxu0 0.0
        %1149 = vmatprep.subr.mxu0 0.0
        %1150 = vmatpush1.msra.mxu0 0.0
        %1151 = vmatprep.subr.mxu0 0.0
        %1152 = vmatpush1.msra.mxu0 0.0
        %1153 = vmatprep.subr.mxu0 0.0
        %1154 = vmatpush1.msra.mxu0 0.0
        %1155 = vmatprep.subr.mxu0 0.0
        %1156 = vmatpush1.msra.mxu0 0.0
        %1157 = vmatprep.subr.mxu0 0.0
        %1158 = vmatpush1.msra.mxu0 0.0
        %1159 = vmatprep.subr.mxu0 0.0
        %1160 = vmatpush1.msra.mxu0 0.0
        %1161 = vmatprep.mubr.f32.mxu0 0.0
        %v1162 = vand.u32 %v788, 4294901760
        %1163 = vmatmul.mubr.f32.gmra.mrb[0].mxu0 %v1162
        %v1164 = vpop.f32.mrb[0].mxu0
        %v1165 = vadd.f32 %v1091, %v1164
        %v1166 = vpop.f32.mrb[0].mxu0
        %1167 = vdwg.mxu0
        %1168 = vmatprep.subr.mxu0 0.0
        %v1169 = vand.u32 %v792, 4294901760
        %1170 = vmatpush1.msra.mxu0 %v1169
        %1171 = vmatprep.subr.mxu0 0.0
        %1172 = vmatpush1.msra.mxu0 0.0
        %1173 = vmatprep.subr.mxu0 0.0
        %1174 = vmatpush1.msra.mxu0 0.0
        %1175 = vmatprep.subr.mxu0 0.0
        %1176 = vmatpush1.msra.mxu0 0.0
        %1177 = vmatprep.subr.mxu0 0.0
        %1178 = vmatpush1.msra.mxu0 0.0
        %1179 = vmatprep.subr.mxu0 0.0
        %1180 = vmatpush1.msra.mxu0 0.0
        %1181 = vmatprep.subr.mxu0 0.0
        %1182 = vmatpush1.msra.mxu0 0.0
        %1183 = vmatprep.subr.mxu0 0.0
        %1184 = vmatpush1.msra.mxu0 0.0
        %1185 = vmatprep.subr.mxu0 0.0
        %1186 = vmatpush1.msra.mxu0 0.0
        %1187 = vmatprep.subr.mxu0 0.0
        %1188 = vmatpush1.msra.mxu0 0.0
        %1189 = vmatprep.subr.mxu0 0.0
        %1190 = vmatpush1.msra.mxu0 0.0
        %1191 = vmatprep.subr.mxu0 0.0
        %1192 = vmatpush1.msra.mxu0 0.0
        %1193 = vmatprep.subr.mxu0 0.0
        %1194 = vmatpush1.msra.mxu0 0.0
        %1195 = vmatprep.subr.mxu0 0.0
        %1196 = vmatpush1.msra.mxu0 0.0
        %1197 = vmatprep.subr.mxu0 0.0
        %1198 = vmatpush1.msra.mxu0 0.0
        %1199 = vmatprep.subr.mxu0 0.0
        %1200 = vmatpush1.msra.mxu0 0.0
        %1201 = vmatprep.subr.mxu0 0.0
        %1202 = vmatpush1.msra.mxu0 0.0
        %1203 = vmatprep.subr.mxu0 0.0
        %1204 = vmatpush1.msra.mxu0 0.0
        %1205 = vmatprep.subr.mxu0 0.0
        %1206 = vmatpush1.msra.mxu0 0.0
        %1207 = vmatprep.subr.mxu0 0.0
        %1208 = vmatpush1.msra.mxu0 0.0
        %1209 = vmatprep.subr.mxu0 0.0
        %1210 = vmatpush1.msra.mxu0 0.0
        %1211 = vmatprep.subr.mxu0 0.0
        %1212 = vmatpush1.msra.mxu0 0.0
        %1213 = vmatprep.subr.mxu0 0.0
        %1214 = vmatpush1.msra.mxu0 0.0
        %1215 = vmatprep.subr.mxu0 0.0
        %1216 = vmatpush1.msra.mxu0 0.0
        %1217 = vmatprep.subr.mxu0 0.0
        %1218 = vmatpush1.msra.mxu0 0.0
        %1219 = vmatprep.subr.mxu0 0.0
        %1220 = vmatpush1.msra.mxu0 0.0
        %1221 = vmatprep.subr.mxu0 0.0
        %1222 = vmatpush1.msra.mxu0 0.0
        %1223 = vmatprep.subr.mxu0 0.0
        %1224 = vmatpush1.msra.mxu0 0.0
        %1225 = vmatprep.subr.mxu0 0.0
        %1226 = vmatpush1.msra.mxu0 0.0
        %1227 = vmatprep.subr.mxu0 0.0
        %1228 = vmatpush1.msra.mxu0 0.0
        %1229 = vmatprep.subr.mxu0 0.0
        %1230 = vmatpush1.msra.mxu0 0.0
        %1231 = vmatprep.subr.mxu0 0.0
        %1232 = vmatpush1.msra.mxu0 0.0
        %1233 = vmatprep.mubr.f32.mxu0 0.0
        %v1234 = vand.u32 %v788, 4294901760
        %1235 = vmatmul.mubr.f32.gmra.mrb[0].mxu0 %v1234
        %v1236 = vpop.f32.mrb[0].mxu0
        %v1237 = vadd.f32 %v1165, %v1236
        %v1238 = vpop.f32.mrb[0].mxu0
        %1239 = vdwg.mxu0
        %v1240 = vld [vmem:[%s327] sm:$0xff]
        %v1241 = vld [vmem:[%s4] sm:$0xff]
        %1243 = vset.pattern.permute.xlu0 0
        %1244 = vperm.xlu0 %1243, %v1241
        %v1245 = vpop.permute.xlu0 %1244
        %v1247 = vadd.f32 %v1237, %v1245
        %v1248 = vmul.f32 %v1240, %v1247
        %1249 = vst [vmem:[%s306] sm:$0xff] %v1248
        %s1250 = sand.u32 %s189, 1
        %s1251 = scalar_lea.sflag [#allocation3], %s1250
        %s1252 = sand.u32 %s189, 1
        %s1253 = smul.addr %s1252, 8
        %s1254 = scalar_lea.vmem [#allocation2], %s1253
        // Predicated region
        $region45: #{pointconv_sm_forward.1} parent=43 // pred_check
          %p1255 = pneg %p199
        $region46: #{pointconv_sm_forward.1} parent=43 // pred_check_branch
          %1257 = sbr.rel (%p1255) target = $region48
        $region47: #{pointconv_sm_forward.1} parent=43 // pred_region
          %s1259 = ssub.s32 128, 128
          %1260 = vsyncadd %s1251, %s1259
          %s1261 = sadd.s32 %s25, %s24
          %s1262 = smul.addr %s1261, 128
          %s1263 = scalar_lea.hbm %s6, %s1262
          %s1265 = sshll.u32 %s1254, 4
          %s1266 = int_to_ptr.vmem [resolvable:$true] %s1265
          %1268 = dma.vmem_to_hbm [thread:$0]  %s1266, 128, %s1263, %s1251
        $region48: #{pointconv_sm_forward.1} parent=43 // pred_fallthru
          _
      $region44: #{pointconv_sm_forward.1} parent=5 // pred_fallthru
        _
      %p1269 = scmp.le.s32.totalorder 2, %s15
      // Predicated region
      $region49: #{pointconv_sm_forward.1} parent=5 // pred_check
        %p1270 = pneg %p1269
      $region50: #{pointconv_sm_forward.1} parent=5 // pred_check_branch
        %1272 = sbr.rel (%p1270) target = $region52
      $region51: #{pointconv_sm_forward.1} parent=5 // pred_region
        %s1273 = ssub.s32 %s15, 2
        // Predicated region
        $region53: #{pointconv_sm_forward.1} parent=51 // pred_check
          %p1274 = pneg %p205
        $region54: #{pointconv_sm_forward.1} parent=51 // pred_check_branch
          %1276 = sbr.rel (%p1274) target = $region56
        $region55: #{pointconv_sm_forward.1} parent=51 // pred_region
          %s1277 = sand.u32 %s190, 1
          %s1278 = scalar_lea.sflag [#allocation3], %s1277
          %s1279 = sand.u32 %s190, 1
          %s1280 = smul.addr %s1279, 8
          %s1281 = scalar_lea.vmem [#allocation2], %s1280
          %1282 = dma.done %s1278, 128
        $region56: #{pointconv_sm_forward.1} parent=51 // pred_fallthru
          _
      $region52: #{pointconv_sm_forward.1} parent=5 // pred_fallthru
        _
    $region6: #{pointconv_sm_forward.1} parent=1 // loop_footer
      %s19 = sadd.s32 1, %s15
    $region7: #{pointconv_sm_forward.1} parent=1 // loop_footer_branch
      %14 = sbr.rel target = $region3
    $region8: #{pointconv_sm_forward.1} parent=1 // loop_exit
      _
    %1283 = vsyncpa [#allocation3], 1
    %s1284 = scalar_lea.sflag [#allocation3], 1
    %1285 = vsyncpa %s1284, 1

</llo_original>
